<compile_context>
chip_gen: v6e
topology: v6e:2x2x1
jax: 0.10.0
libtpu: 0.0.40
codegen_flags: <defaults>
</compile_context>

<pallas_src>
import functools

import jax
import jax.numpy as jnp
from jax import lax
from jax.experimental import pallas as pl
from jax.experimental.pallas import tpu as pltpu

_PAD_SENTINEL = 1e30   # tanh saturates -> padded samples contribute exactly 0
_LANES = 128           # accumulator lane width
_INNER_N = 512         # in-kernel chunk of the x tile (multiple of _LANES)


def _soft_histogram_kernel(x_ref, c_ref, o_ref, acc_ref, *,
                           half_sigma, h, inner_n, use_bf16_tanh):
    # x_ref:   (1, tile_n)           raw samples (lane-dense)
    # c_ref:   (bins_block, 1)       centers pre-scaled by sigma/2
    # o_ref:   (1, 1, bins_block)    per-bin soft counts (written on last step)
    # acc_ref: (bins_block, 128)     f32 running partial sums (small VMEM scratch)
    step = pl.program_id(1)

    @pl.when(step == 0)
    def _init():
        acc_ref[...] = jnp.zeros_like(acc_ref)

    c = c_ref[...]                                  # (bins_block, 1)
    tile_n = x_ref.shape[1]
    n_inner = tile_n // inner_n
    n_fold = inner_n // _LANES

    def body(j, carry):
        off = pl.multiple_of(j * inner_n, inner_n)
        xs = half_sigma * x_ref[:, pl.ds(off, inner_n)]      # (1, inner_n)
        t = xs - c                                           # (bins_block, inner_n)
        a = t + h
        b = t - h
        # sigmoid(sigma*(d+delta/2)) - sigmoid(sigma*(d-delta/2))
        #   = 0.5 * (tanh((sigma/2)*d + h) - tanh((sigma/2)*d - h)),  h = sigma*delta/4
        if use_bf16_tanh:
            # v6e/v7x: EUP runs bf16 ~2x f32; difference/accumulation stays f32.
            s = (jnp.tanh(a.astype(jnp.bfloat16)).astype(jnp.float32)
                 - jnp.tanh(b.astype(jnp.bfloat16)).astype(jnp.float32))
        else:
            s = jnp.tanh(a) - jnp.tanh(b)
        # Fold the (bins_block, inner_n) slab into 128 lanes with VALU adds only
        # (no big accumulator load/store; the single XLU/MXU reduce is in finalize).
        partial = s[:, 0:_LANES]
        for jj in range(1, n_fold):
            partial = partial + s[:, jj * _LANES:(jj + 1) * _LANES]
        acc_ref[...] += partial
        return carry

    lax.fori_loop(0, n_inner, body, 0, unroll=(n_inner <= 8))

    @pl.when(step == pl.num_programs(1) - 1)
    def _finalize():
        # Single cross-lane reduction pushed onto the (idle) MXU; the result is
        # lane-dense (bins on lanes) so the HBM writeback is not a strided column.
        ones = jnp.ones((8, _LANES), jnp.float32)
        red = lax.dot_general(
            ones, acc_ref[...],
            dimension_numbers=(((1,), (1,)), ((), ())),
            preferred_element_type=jnp.float32)              # (8, bins_block)
        o_ref[0] = 0.5 * red[0:1, :]


def _round_up(a, b):
    return ((a + b - 1) // b) * b


def _pick_bins_block(bins):
    # Keep >=2 bins chunks whenever bins allows, so the "parallel" grid axis has
    # something to shard across v7x's two TensorCores; cap at 64 to bound the
    # per-iteration vreg working set. Falls back to the full dim (always legal).
    target = max(8, bins // 2)
    for cand in (64, 32, 16, 8):
        if cand <= target and bins % cand == 0:
            return cand
    return bins


def _bf16_eup_available():
    # bf16 tanh only pays off (and is only used) on v6e / v7x; v5e has no bf16 EUP.
    try:
        kind = jax.devices()[0].device_kind.lower()
    except Exception:
        return False
    return any(tag in kind for tag in ("v6", "v7", "7x"))


def soft_histogram(x, *, bins, vmin, vmax, sigma,
                   tile_n_max=65536, use_bf16_tanh=None):
    """x: (N,) float32 -> (bins,) float32, matching SoftHistogram.forward."""
    if use_bf16_tanh is None:
        use_bf16_tanh = _bf16_eup_available()

    x = jnp.asarray(x, jnp.float32).reshape(-1)
    n = x.shape[0]
    delta = float(vmax - vmin) / float(bins)
    half_sigma = 0.5 * float(sigma)
    h = half_sigma * (0.5 * delta)          # compile-time constant

    # Deterministic "parameter" init exactly as the module's __init__,
    # pre-scaled by sigma/2 (static parameter prep, not input pre-scaling).
    centers = float(vmin) + delta * (jnp.arange(bins, dtype=jnp.float32) + 0.5)
    c2 = (half_sigma * centers).reshape(bins, 1)

    # Tiling: N is the reduction ("arbitrary") axis, bins chunks are "parallel".
    tile_n = max(_INNER_N, min(_round_up(int(tile_n_max), _INNER_N),
                               _round_up(n, _INNER_N)))
    n_pad = _round_up(n, tile_n)
    n_steps = n_pad // tile_n
    bins_block = _pick_bins_block(bins)
    bins_chunks = bins // bins_block
    grid = (bins_chunks, n_steps)

    # Pad with a huge sentinel: tanh(t+h) == tanh(t-h) exactly -> zero contribution
    # (holds on the bf16 path too: both args round to the same bf16 value).
    x2 = jnp.pad(x, (0, n_pad - n), constant_values=_PAD_SENTINEL).reshape(1, n_pad)

    kernel = functools.partial(
        _soft_histogram_kernel, half_sigma=half_sigma, h=h,
        inner_n=_INNER_N, use_bf16_tanh=bool(use_bf16_tanh))

    out = pl.pallas_call(
        kernel,
        out_shape=jax.ShapeDtypeStruct((bins_chunks, 1, bins_block), jnp.float32),
        grid_spec=pltpu.PrefetchScalarGridSpec(
            num_scalar_prefetch=0,
            grid=grid,
            in_specs=[
                pl.BlockSpec((1, tile_n), lambda b, i: (0, i)),
                pl.BlockSpec((bins_block, 1), lambda b, i: (b, 0)),
            ],
            out_specs=pl.BlockSpec((1, 1, bins_block), lambda b, i: (b, 0, 0)),
            scratch_shapes=[pltpu.VMEM((bins_block, _LANES), jnp.float32)],
        ),
        compiler_params=pltpu.CompilerParams(
            dimension_semantics=("parallel", "arbitrary")),
        cost_estimate=pl.CostEstimate(
            flops=6 * bins * n,
            transcendentals=2 * bins * n,
            bytes_accessed=4 * (n + 2 * bins)),
    )(x2, c2)

    return out.reshape(bins)


def _reference(x, *, bins, vmin, vmax, sigma):
    delta = float(vmax - vmin) / float(bins)
    centers = float(vmin) + delta * (jnp.arange(bins, dtype=jnp.float32) + 0.5)
    d = x[None, :] - centers[:, None]
    s = jax.nn.sigmoid(sigma * (d + delta / 2)) - jax.nn.sigmoid(sigma * (d - delta / 2))
    return s.sum(axis=1)


if __name__ == "__main__":
    BINS = 64
    VMIN, VMAX = 0.0, 255.0
    SIGMA = 3.0

    # Module-sized input: x = torch.rand(224) * 255
    x = jax.random.uniform(jax.random.PRNGKey(0), (224,), dtype=jnp.float32) * 255.0
    ref = _reference(x, bins=BINS, vmin=VMIN, vmax=VMAX, sigma=SIGMA)

    # f32 path: tight parity with the sigmoid reference.
    out = jax.block_until_ready(
        soft_histogram(x, bins=BINS, vmin=VMIN, vmax=VMAX, sigma=SIGMA,
                       use_bf16_tanh=False))
    assert out.shape == (BINS,)
    assert jnp.allclose(out, ref, atol=1e-3, rtol=1e-3), \
        float(jnp.max(jnp.abs(out - ref)))

    # Non-aligned N + forced multi-step reduction grid (sentinel-padding path).
    x_big = jax.random.uniform(jax.random.PRNGKey(1), (5000,), dtype=jnp.float32) * 255.0
    ref_big = _reference(x_big, bins=BINS, vmin=VMIN, vmax=VMAX, sigma=SIGMA)
    out_big = jax.block_until_ready(
        soft_histogram(x_big, bins=BINS, vmin=VMIN, vmax=VMAX, sigma=SIGMA,
                       tile_n_max=1024, use_bf16_tanh=False))
    assert jnp.allclose(out_big, ref_big, atol=1e-3, rtol=1e-3), \
        float(jnp.max(jnp.abs(out_big - ref_big)))

    # Auto path (bf16 tanh on v6e/v7x, f32 elsewhere); tolerance sized for bf16 EUP.
    out_auto = jax.block_until_ready(
        soft_histogram(x_big, bins=BINS, vmin=VMIN, vmax=VMAX, sigma=SIGMA))
    assert jnp.allclose(out_auto, ref_big, atol=0.5, rtol=0.02), \
        float(jnp.max(jnp.abs(out_auto - ref_big)))

    print("KERNEL_OK")
</pallas_src>

<mosaic_0001>
module attributes {stable_mosaic.version = 11 : i64} {
  func.func @_soft_histogram_kernel(%arg0: i32, %arg1: i32, %arg2: memref<1x512xf32, #tpu.memory_space<vmem>>, %arg3: memref<32x1xf32, #tpu.memory_space<vmem>>, %arg4: memref<1x1x32xf32, #tpu.memory_space<vmem>>, %arg5: memref<32x128xf32, #tpu.memory_space<vmem>>) attributes {dimension_semantics = [#tpu.dimension_semantics<parallel>, #tpu.dimension_semantics<arbitrary>], iteration_bounds = array<i64: 2, 1>, scalar_prefetch = 0 : i64, scratch_operands = 1 : i64, tpu.core_type = #tpu.core_type<tc>, window_params = [{transform_indices = @transform_0, window_bounds = array<i64: 1, 512>}, {transform_indices = @transform_1, window_bounds = array<i64: 32, 1>}, {transform_indices = @transform_2, window_bounds = array<i64: 1, 1, 32>}]} {
    %c0_i32 = arith.constant 0 : i32
    %0 = arith.cmpi eq, %arg1, %c0_i32 : i32
    %1 = arith.extui %0 : i1 to i32
    %c0_i32_0 = arith.constant 0 : i32
    %2 = arith.cmpi ne, %1, %c0_i32_0 : i32
    scf.if %2 {
      %cst_12 = arith.constant 0.000000e+00 : f32
      %33 = vector.broadcast %cst_12 : f32 to vector<32x128xf32>
      %c0_13 = arith.constant 0 : index
      %c0_14 = arith.constant 0 : index
      %34 = vector.load %arg5[%c0_13, %c0_14] : memref<32x128xf32, #tpu.memory_space<vmem>>, vector<32x128xf32>
      tpu.vector_store %arg5[%c0_13, %c0_14], %33 {strides = array<i32>} : memref<32x128xf32, #tpu.memory_space<vmem>>, vector<32x128xf32>,
    } else {
    }
    %c0 = arith.constant 0 : index
    %c0_1 = arith.constant 0 : index
    %3 = vector.load %arg3[%c0, %c0_1] : memref<32x1xf32, #tpu.memory_space<vmem>>, vector<32x1xf32>
    %c0_i32_2 = arith.constant 0 : i32
    %c512_i32 = arith.constant 512 : i32
    %4 = arith.muli %c0_i32_2, %c512_i32 : i32
    %5 = tpu.assume_multiple %4, 512 : i32
    %c0_3 = arith.constant 0 : index
    %6 = arith.index_cast %5 : i32 to index
    %7 = vector.load %arg2[%c0_3, %6] : memref<1x512xf32, #tpu.memory_space<vmem>>, vector<1x512xf32>
    %cst = arith.constant 1.500000e+00 : f32
    %8 = vector.broadcast %cst : f32 to vector<1x512xf32>
    %9 = arith.mulf %8, %7 : vector<1x512xf32>
    %10 = vector.broadcast %9 : vector<1x512xf32> to vector<32x512xf32>
    %11 = vector.broadcast %3 : vector<32x1xf32> to vector<32x512xf32>
    %12 = arith.subf %10, %11 : vector<32x512xf32>
    %cst_4 = arith.constant 2.98828125 : f32
    %13 = vector.broadcast %cst_4 : f32 to vector<32x512xf32>
    %14 = arith.addf %12, %13 : vector<32x512xf32>
    %cst_5 = arith.constant 2.98828125 : f32
    %15 = vector.broadcast %cst_5 : f32 to vector<32x512xf32>
    %16 = arith.subf %12, %15 : vector<32x512xf32>
    %17 = math.tanh %14 : vector<32x512xf32>
    %18 = math.tanh %16 : vector<32x512xf32>
    %19 = arith.subf %17, %18 : vector<32x512xf32>
    %20 = vector.extract_strided_slice %19 {offsets = [0, 0], sizes = [32, 128], strides = [1, 1]} : vector<32x512xf32> to vector<32x128xf32>
    %21 = vector.extract_strided_slice %19 {offsets = [0, 128], sizes = [32, 128], strides = [1, 1]} : vector<32x512xf32> to vector<32x128xf32>
    %22 = arith.addf %20, %21 : vector<32x128xf32>
    %23 = vector.extract_strided_slice %19 {offsets = [0, 256], sizes = [32, 128], strides = [1, 1]} : vector<32x512xf32> to vector<32x128xf32>
    %24 = arith.addf %22, %23 : vector<32x128xf32>
    %25 = vector.extract_strided_slice %19 {offsets = [0, 384], sizes = [32, 128], strides = [1, 1]} : vector<32x512xf32> to vector<32x128xf32>
    %26 = arith.addf %24, %25 : vector<32x128xf32>
    %c0_6 = arith.constant 0 : index
    %c0_7 = arith.constant 0 : index
    %27 = vector.load %arg5[%c0_6, %c0_7] : memref<32x128xf32, #tpu.memory_space<vmem>>, vector<32x128xf32>
    %28 = arith.addf %27, %26 : vector<32x128xf32>
    %c0_8 = arith.constant 0 : index
    %c0_9 = arith.constant 0 : index
    %29 = vector.load %arg5[%c0_8, %c0_9] : memref<32x128xf32, #tpu.memory_space<vmem>>, vector<32x128xf32>
    tpu.vector_store %arg5[%c0_8, %c0_9], %28 {strides = array<i32>} : memref<32x128xf32, #tpu.memory_space<vmem>>, vector<32x128xf32>,
    %c1_i32 = arith.constant 1 : i32
    %c0_i32_10 = arith.constant 0 : i32
    %30 = arith.cmpi eq, %arg1, %c0_i32_10 : i32
    %31 = arith.extui %30 : i1 to i32
    %c0_i32_11 = arith.constant 0 : i32
    %32 = arith.cmpi ne, %31, %c0_i32_11 : i32
    scf.if %32 {
      %cst_12 = arith.constant 1.000000e+00 : f32
      %33 = vector.broadcast %cst_12 : f32 to vector<8x128xf32>
      %c0_13 = arith.constant 0 : index
      %c0_14 = arith.constant 0 : index
      %34 = vector.load %arg5[%c0_13, %c0_14] : memref<32x128xf32, #tpu.memory_space<vmem>>, vector<32x128xf32>
      %cst_15 = arith.constant dense<0.000000e+00> : vector<8x32xf32>
      %35 = tpu.matmul %33, %34, %cst_15 {dimension_numbers = #tpu.dot_dimension_numbers<[1], [1], [0], [0], [0, 0, 1, 0], [], []>} : vector<8x128xf32>, vector<32x128xf32>, vector<8x32xf32> -> vector<8x32xf32>
      %36 = vector.extract_strided_slice %35 {offsets = [0, 0], sizes = [1, 32], strides = [1, 1]} : vector<8x32xf32> to vector<1x32xf32>
      %cst_16 = arith.constant 5.000000e-01 : f32
      %37 = vector.broadcast %cst_16 : f32 to vector<1x32xf32>
      %38 = arith.mulf %37, %36 : vector<1x32xf32>
      %c0_17 = arith.constant 0 : index
      %c0_18 = arith.constant 0 : index
      %c0_19 = arith.constant 0 : index
      %39 = vector.load %arg4[%c0_17, %c0_18, %c0_19] : memref<1x1x32xf32, #tpu.memory_space<vmem>>, vector<1x1x32xf32>
      %40 = vector.shape_cast %39 : vector<1x1x32xf32> to vector<1x32xf32>
      %41 = vector.shape_cast %38 : vector<1x32xf32> to vector<1x1x32xf32>
      tpu.vector_store %arg4[%c0_17, %c0_18, %c0_19], %41 {strides = array<i32>} : memref<1x1x32xf32, #tpu.memory_space<vmem>>, vector<1x1x32xf32>,
    } else {
    }
    return
  }
  func.func @transform_0(%arg0: i32, %arg1: i32) -> (i32, i32) {
    %c0_i32 = arith.constant 0 : i32
    %c0_i32_0 = arith.constant 0 : i32
    return %c0_i32, %arg1 : i32, i32
  }
  func.func @transform_1(%arg0: i32, %arg1: i32) -> (i32, i32) {
    %c0_i32 = arith.constant 0 : i32
    %c0_i32_0 = arith.constant 0 : i32
    return %arg0, %c0_i32 : i32, i32
  }
  func.func @transform_2(%arg0: i32, %arg1: i32) -> (i32, i32, i32) {
    %c0_i32 = arith.constant 0 : i32
    %c0_i32_0 = arith.constant 0 : i32
    %c0_i32_1 = arith.constant 0 : i32
    return %arg0, %c0_i32, %c0_i32_0 : i32, i32, i32
  }
}

</mosaic_0001>

<llo_original>
// kernel: tpu_custom_call.1
$region0: #{tpu_custom_call.1}
  #allocation0 [shape = 'u32[]', space=smem, size = 0x4, offset = 0x4, fixed_abs, tag = 'smem constant byte address 0x4 - core index']
  #allocation1 [shape = 'u32[144,128]{1,0:T(1,128)}', space=vmem, size = 0x12000, scoped, tag = 'internal scratch']
  #allocation2 [shape = 'f32[32,128]{1,0:T(8,128)}', space=vmem, size = 0x4000, scoped, tag = 'scratch operand']
  %s0 = inlined_call_operand.vmem [shape: f32[1,512], index: 0, kind: input, shape index: {}]
  %s1 = inlined_call_operand.vmem [shape: f32[64,1], index: 1, kind: input, shape index: {}]
  %s2 = inlined_call_operand.hbm [shape: f32[2,1,32], index: 2, kind: output, shape index: {}]
  %s3 = sld [smem:[#allocation0]]
  $region49: #{tpu_custom_call.1} parent=0
    _
  %s5 = ssub.s32 1, %s3
  %s6 = scalar_select 0, %s5, %s3
  $region1: #{tpu_custom_call.1} parent=0
    #allocation3 [shape = 'u8[1024]{0}', space=vmem, size = 0x400, scoped, tag = 'output window, operand 0']
    #allocation4 [shape = 's32[2]{0}', space=sflag, size = 0x8, scoped, tag = 'scoped memory for tpu_custom_call.1']
    %7 = vsyncpa [#allocation4], 0
    %s8 = scalar_lea.sflag [#allocation4], 1
    %9 = vsyncpa %s8, 0
    loop: start=0, step=1, limit=4
    $region2: #{tpu_custom_call.1} parent=1 // loop_pre_header
      _
    $region3: #{tpu_custom_call.1} parent=1 // loop_header
      %s11 = sphi 0, %s15
      %p12 = scmp.ge.s32.totalorder %s11, 4
      %s18 = sphi 0, %s30
      %s19 = sphi 0, %s26
      %s20 = sphi 0, %s18
      %s21 = sphi 0, %s19
      %s22 = sphi 0, %s20
      %s23 = sphi 0, %s21
      %s33 = sphi 0, %s35
      %s36 = sphi 0, %s33
      %s37 = sphi 0, %s36
      %s53 = sphi 0, %s37
      %s59 = sphi 0, %s61
      %s62 = sphi 0, %s59
      %s63 = sphi 0, %s62
      %s79 = sphi 0, %s63
      %s85 = sphi 0, %s87
      %s88 = sphi 0, %s85
      %s89 = sphi 0, %s88
      %s105 = sphi 0, %s89
    $region4: #{tpu_custom_call.1} parent=1 // loop_header_branch
      %14 = sbr.rel (%p12) target = $region8
    $region5: #{tpu_custom_call.1} parent=1 // loop_body
      %s16 = ssub.s32 %s11, 1
      %s17 = ssub.s32 %s11, 2
      %s24 = sadd.s32 1, %s19
      %p25 = scmp.ge.s32.totalorder %s24, 1
      %s26 = scalar_select %p25, 0, %s24
      %s27 = sadd.s32 1, %s18
      %s28 = scalar_select %p25, %s27, %s18
      %p29 = scmp.ge.s32.totalorder %s28, 2
      %s30 = scalar_select %p29, 0, %s28
      %s31 = ssub.s32 %s19, %s26
      %p32 = scmp.eq.s32.totalorder %s31, 0
      %s34 = sadd.s32 %s33, 1
      %s35 = scalar_select %p32, %s33, %s34
      %p38 = pneg %p32
      %p39 = scmp.eq.s32.totalorder %s11, 1
      %p40 = por %p38, %p39
      %p41 = scmp.ne.s32.totalorder %s33, %s36
      %p42 = scmp.eq.s32.totalorder %s11, 0
      %p43 = por %p41, %p42
      %p44 = scmp.ne.s32.totalorder %s33, %s36
      %p45 = scmp.eq.s32.totalorder %s16, 1
      %p46 = por %p44, %p45
      %p47 = scmp.ne.s32.totalorder %s36, %s37
      %p48 = scmp.eq.s32.totalorder %s16, 0
      %p49 = por %p47, %p48
      %p50 = scmp.ne.s32.totalorder %s36, %s37
      %p51 = scmp.eq.s32.totalorder %s17, 1
      %p52 = por %p50, %p51
      %p54 = scmp.ne.s32.totalorder %s37, %s53
      %p55 = scmp.eq.s32.totalorder %s17, 0
      %p56 = por %p54, %p55
      %s57 = ssub.s32 %s18, %s30
      %p58 = scmp.eq.s32.totalorder %s57, 0
      %s60 = sadd.s32 %s59, 1
      %s61 = scalar_select %p58, %s59, %s60
      %p64 = pneg %p58
      %p65 = scmp.eq.s32.totalorder %s11, 1
      %p66 = por %p64, %p65
      %p67 = scmp.ne.s32.totalorder %s59, %s62
      %p68 = scmp.eq.s32.totalorder %s11, 0
      %p69 = por %p67, %p68
      %p70 = scmp.ne.s32.totalorder %s59, %s62
      %p71 = scmp.eq.s32.totalorder %s16, 1
      %p72 = por %p70, %p71
      %p73 = scmp.ne.s32.totalorder %s62, %s63
      %p74 = scmp.eq.s32.totalorder %s16, 0
      %p75 = por %p73, %p74
      %p76 = scmp.ne.s32.totalorder %s62, %s63
      %p77 = scmp.eq.s32.totalorder %s17, 1
      %p78 = por %p76, %p77
      %p80 = scmp.ne.s32.totalorder %s63, %s79
      %p81 = scmp.eq.s32.totalorder %s17, 0
      %p82 = por %p80, %p81
      %s83 = ssub.s32 %s18, %s30
      %p84 = scmp.eq.s32.totalorder %s83, 0
      %s86 = sadd.s32 %s85, 1
      %s87 = scalar_select %p84, %s85, %s86
      %p90 = pneg %p84
      %p91 = scmp.eq.s32.totalorder %s11, 1
      %p92 = por %p90, %p91
      %p93 = scmp.ne.s32.totalorder %s85, %s88
      %p94 = scmp.eq.s32.totalorder %s11, 0
      %p95 = por %p93, %p94
      %p96 = scmp.ne.s32.totalorder %s85, %s88
      %p97 = scmp.eq.s32.totalorder %s16, 1
      %p98 = por %p96, %p97
      %p99 = scmp.ne.s32.totalorder %s88, %s89
      %p100 = scmp.eq.s32.totalorder %s16, 0
      %p101 = por %p99, %p100
      %p102 = scmp.ne.s32.totalorder %s88, %s89
      %p103 = scmp.eq.s32.totalorder %s17, 1
      %p104 = por %p102, %p103
      %p106 = scmp.ne.s32.totalorder %s89, %s105
      %p107 = scmp.eq.s32.totalorder %s17, 0
      %p108 = por %p106, %p107
      %p109 = scmp.le.s32.totalorder 1, %s11
      %p110 = scmp.lt.s32.totalorder %s11, 3
      %p111 = pnand %p109, %p110
      %p112 = pneg %p111
      // Predicated region
      $region9: #{tpu_custom_call.1} parent=5 // pred_check
        _
      $region10: #{tpu_custom_call.1} parent=5 // pred_check_branch
        %114 = sbr.rel (%p111) target = $region12
      $region11: #{tpu_custom_call.1} parent=5 // pred_region
        %s115 = ssub.s32 %s11, 1
        // Predicated region
        $region13: #{tpu_custom_call.1} parent=11 // pred_check
          %p116 = pneg %p49
        $region14: #{tpu_custom_call.1} parent=11 // pred_check_branch
          %118 = sbr.rel (%p116) target = $region16
        $region15: #{tpu_custom_call.1} parent=11 // pred_region
          %s119 = smul.u32 4, %s21
          %p120 = scmp.lt.s32.totalorder %s119, 3
          %s121 = scalar_select %p120, %s119, 3
          %s122 = scalar_lea.vmem %s0, %s121
          %s123 = smul.u32 4, %s21
        $region16: #{tpu_custom_call.1} parent=11 // pred_fallthru
          _
      $region12: #{tpu_custom_call.1} parent=5 // pred_fallthru
        _
      %p124 = scmp.lt.s32.totalorder %s11, 2
      // Predicated region
      $region17: #{tpu_custom_call.1} parent=5 // pred_check
        %p125 = pneg %p124
      $region18: #{tpu_custom_call.1} parent=5 // pred_check_branch
        %127 = sbr.rel (%p125) target = $region20
      $region19: #{tpu_custom_call.1} parent=5 // pred_region
        // Predicated region
        $region21: #{tpu_custom_call.1} parent=19 // pred_check
          %p128 = pneg %p69
        $region22: #{tpu_custom_call.1} parent=19 // pred_check_branch
          %130 = sbr.rel (%p128) target = $region24
        $region23: #{tpu_custom_call.1} parent=19 // pred_region
          %s131 = smul.u32 4, %s18
          %p132 = scmp.lt.s32.totalorder %s131, 7
          %s133 = scalar_select %p132, %s131, 7
          %s134 = smul.addr %s133, 8
          %s135 = scalar_lea.vmem %s1, %s134
          %s136 = smul.u32 4, %s18
        $region24: #{tpu_custom_call.1} parent=19 // pred_fallthru
          _
      $region20: #{tpu_custom_call.1} parent=5 // pred_fallthru
        _
      %p137 = scmp.le.s32.totalorder 1, %s11
      %p138 = scmp.lt.s32.totalorder %s11, 3
      %p139 = pnand %p137, %p138
      %p140 = pneg %p139
      // Predicated region
      $region25: #{tpu_custom_call.1} parent=5 // pred_check
        _
      $region26: #{tpu_custom_call.1} parent=5 // pred_check_branch
        %142 = sbr.rel (%p139) target = $region28
      $region27: #{tpu_custom_call.1} parent=5 // pred_region
        %s143 = ssub.s32 %s11, 1
        %s144 = smul.u32 4, %s21
        %p145 = scmp.lt.s32.totalorder %s144, 3
        %s146 = scalar_select %p145, %s144, 3
        %s147 = scalar_lea.vmem %s0, %s146
        %p148 = pneg %p49
        %p149 = pneg %p46
        %s150 = smul.u32 4, %s20
        %p151 = scmp.lt.s32.totalorder %s150, 7
        %s152 = scalar_select %p151, %s150, 7
        %s153 = smul.addr %s152, 8
        %s154 = scalar_lea.vmem %s1, %s153
        %p155 = pneg %p75
        %p156 = pneg %p72
        %p157 = pneg %p101
        %p158 = pneg %p98
        %s159 = sand.u32 %s88, 1
        %s160 = scalar_lea.sflag [#allocation4], %s159
        %s161 = sand.u32 %s88, 1
        %s162 = scalar_lea.vmem [#allocation3], %s161
        %s163 = smul.u32 4, %s21
        %p164 = scmp.lt.s32.totalorder %s163, 3
        %s165 = scalar_select %p164, %s163, 3
        %s166 = scalar_lea.vmem %s0, %s165
        %s167 = smul.u32 4, %s21
        %s168 = smul.u32 4, %s20
        %p169 = scmp.lt.s32.totalorder %s168, 7
        %s170 = scalar_select %p169, %s168, 7
        %s171 = smul.addr %s170, 8
        %s172 = scalar_lea.vmem %s1, %s171
        %s173 = smul.u32 4, %s20
        %p174 = scmp.eq.s32.totalorder %s21, 0
        // Predicated region
        $region29: #{tpu_custom_call.1} parent=27 // pred_check
          %p175 = pneg %p174
        $region30: #{tpu_custom_call.1} parent=27 // pred_check_branch
          %177 = sbr.rel (%p175) target = $region32
        $region31: #{tpu_custom_call.1} parent=27 // pred_region
          %178 = vst [vmem:[#allocation2] sm:$0xff] 0.0
          %179 = vst [vmem:[#allocation2 + $0x8] sm:$0xff] 0.0
          %180 = vst [vmem:[#allocation2 + $0x10] sm:$0xff] 0.0
          %181 = vst [vmem:[#allocation2 + $0x18] sm:$0xff] 0.0
        $region32: #{tpu_custom_call.1} parent=27 // pred_fallthru
          _
        %v182 = vld [vmem:[%s172] sm:$0xff]
        %v183 = vld [vmem:[%s172 + $0x8] sm:$0xff]
        %v184 = vld [vmem:[%s172 + $0x10] sm:$0xff]
        %v185 = vld [vmem:[%s172 + $0x18] sm:$0xff]
        %v186 = vld [vmem:[%s166] sm:$0xf]
        %v187 = vmul.f32 %v186, 1.5
        %v189 = vlaneseq
        %v190 = vshrl.u32 %v189, 7
        %v191 = vsub.s32 0, %v190
        %v192 = vrot.slane %v187, %v191
        %v193 = vlaneseq
        %v194 = vshrl.u32 %v193, 7
        %v195 = vsub.s32 1, %v194
        %v196 = vrot.slane %v187, %v195
        %v197 = vlaneseq
        %v198 = vshrl.u32 %v197, 7
        %v199 = vsub.s32 2, %v198
        %v200 = vrot.slane %v187, %v199
        %v201 = vlaneseq
        %v202 = vshrl.u32 %v201, 7
        %v203 = vsub.s32 3, %v202
        %v204 = vrot.slane %v187, %v203
        %210 = vset.pattern.permute.xlu0 0
        %211 = vperm.xlu0 %210, %v182
        %v212 = vpop.permute.xlu0 %211
        %215 = vset.pattern.permute.xlu0 0
        %216 = vperm.xlu0 %215, %v183
        %v217 = vpop.permute.xlu0 %216
        %220 = vset.pattern.permute.xlu0 0
        %221 = vperm.xlu0 %220, %v184
        %v222 = vpop.permute.xlu0 %221
        %225 = vset.pattern.permute.xlu0 0
        %226 = vperm.xlu0 %225, %v185
        %v227 = vpop.permute.xlu0 %226
        %v229 = vsub.f32 %v192, %v212
        %v230 = vsub.f32 %v196, %v212
        %v231 = vsub.f32 %v200, %v212
        %v232 = vsub.f32 %v204, %v212
        %v233 = vsub.f32 %v192, %v217
        %v234 = vsub.f32 %v196, %v217
        %v235 = vsub.f32 %v200, %v217
        %v236 = vsub.f32 %v204, %v217
        %v237 = vsub.f32 %v192, %v222
        %v238 = vsub.f32 %v196, %v222
        %v239 = vsub.f32 %v200, %v222
        %v240 = vsub.f32 %v204, %v222
        %v241 = vsub.f32 %v192, %v227
        %v242 = vsub.f32 %v196, %v227
        %v243 = vsub.f32 %v200, %v227
        %v244 = vsub.f32 %v204, %v227
        %v245 = vadd.f32 %v229, 2.9882813
        %v246 = vadd.f32 %v230, 2.9882813
        %v247 = vadd.f32 %v231, 2.9882813
        %v248 = vadd.f32 %v232, 2.9882813
        %v249 = vadd.f32 %v233, 2.9882813
        %v250 = vadd.f32 %v234, 2.9882813
        %v251 = vadd.f32 %v235, 2.9882813
        %v252 = vadd.f32 %v236, 2.9882813
        %v253 = vadd.f32 %v237, 2.9882813
        %v254 = vadd.f32 %v238, 2.9882813
        %v255 = vadd.f32 %v239, 2.9882813
        %v256 = vadd.f32 %v240, 2.9882813
        %v257 = vadd.f32 %v241, 2.9882813
        %v258 = vadd.f32 %v242, 2.9882813
        %v259 = vadd.f32 %v243, 2.9882813
        %v260 = vadd.f32 %v244, 2.9882813
        %v261 = vsub.f32 %v229, 2.9882813
        %v262 = vsub.f32 %v230, 2.9882813
        %v263 = vsub.f32 %v231, 2.9882813
        %v264 = vsub.f32 %v232, 2.9882813
        %v265 = vsub.f32 %v233, 2.9882813
        %v266 = vsub.f32 %v234, 2.9882813
        %v267 = vsub.f32 %v235, 2.9882813
        %v268 = vsub.f32 %v236, 2.9882813
        %v269 = vsub.f32 %v237, 2.9882813
        %v270 = vsub.f32 %v238, 2.9882813
        %v271 = vsub.f32 %v239, 2.9882813
        %v272 = vsub.f32 %v240, 2.9882813
        %v273 = vsub.f32 %v241, 2.9882813
        %v274 = vsub.f32 %v242, 2.9882813
        %v275 = vsub.f32 %v243, 2.9882813
        %v276 = vsub.f32 %v244, 2.9882813
        %v277 = vtanh.pop %v245
        %v278 = vtanh.pop %v246
        %v279 = vtanh.pop %v247
        %v280 = vtanh.pop %v248
        %v281 = vtanh.pop %v249
        %v282 = vtanh.pop %v250
        %v283 = vtanh.pop %v251
        %v284 = vtanh.pop %v252
        %v285 = vtanh.pop %v253
        %v286 = vtanh.pop %v254
        %v287 = vtanh.pop %v255
        %v288 = vtanh.pop %v256
        %v289 = vtanh.pop %v257
        %v290 = vtanh.pop %v258
        %v291 = vtanh.pop %v259
        %v292 = vtanh.pop %v260
        %v293 = vtanh.pop %v261
        %v294 = vtanh.pop %v262
        %v295 = vtanh.pop %v263
        %v296 = vtanh.pop %v264
        %v297 = vtanh.pop %v265
        %v298 = vtanh.pop %v266
        %v299 = vtanh.pop %v267
        %v300 = vtanh.pop %v268
        %v301 = vtanh.pop %v269
        %v302 = vtanh.pop %v270
        %v303 = vtanh.pop %v271
        %v304 = vtanh.pop %v272
        %v305 = vtanh.pop %v273
        %v306 = vtanh.pop %v274
        %v307 = vtanh.pop %v275
        %v308 = vtanh.pop %v276
        %v309 = vsub.f32 %v277, %v293
        %v310 = vsub.f32 %v278, %v294
        %v311 = vsub.f32 %v279, %v295
        %v312 = vsub.f32 %v280, %v296
        %v313 = vsub.f32 %v281, %v297
        %v314 = vsub.f32 %v282, %v298
        %v315 = vsub.f32 %v283, %v299
        %v316 = vsub.f32 %v284, %v300
        %v317 = vsub.f32 %v285, %v301
        %v318 = vsub.f32 %v286, %v302
        %v319 = vsub.f32 %v287, %v303
        %v320 = vsub.f32 %v288, %v304
        %v321 = vsub.f32 %v289, %v305
        %v322 = vsub.f32 %v290, %v306
        %v323 = vsub.f32 %v291, %v307
        %v324 = vsub.f32 %v292, %v308
        %v325 = vadd.f32 %v309, %v310
        %v326 = vadd.f32 %v313, %v314
        %v327 = vadd.f32 %v317, %v318
        %v328 = vadd.f32 %v321, %v322
        %v329 = vadd.f32 %v325, %v311
        %v330 = vadd.f32 %v326, %v315
        %v331 = vadd.f32 %v327, %v319
        %v332 = vadd.f32 %v328, %v323
        %v333 = vadd.f32 %v329, %v312
        %v334 = vadd.f32 %v330, %v316
        %v335 = vadd.f32 %v331, %v320
        %v336 = vadd.f32 %v332, %v324
        %v337 = vld [vmem:[#allocation2] sm:$0xff]
        %v338 = vld [vmem:[#allocation2 + $0x8] sm:$0xff]
        %v339 = vld [vmem:[#allocation2 + $0x10] sm:$0xff]
        %v340 = vld [vmem:[#allocation2 + $0x18] sm:$0xff]
        %v341 = vadd.f32 %v337, %v333
        %v342 = vadd.f32 %v338, %v334
        %v343 = vadd.f32 %v339, %v335
        %v344 = vadd.f32 %v340, %v336
        %345 = vst [vmem:[#allocation2] sm:$0xff] %v341
        %346 = vst [vmem:[#allocation2 + $0x8] sm:$0xff] %v342
        %347 = vst [vmem:[#allocation2 + $0x10] sm:$0xff] %v343
        %348 = vst [vmem:[#allocation2 + $0x18] sm:$0xff] %v344
        // Predicated region
        $region33: #{tpu_custom_call.1} parent=27 // pred_check
          %p349 = pneg %p174
        $region34: #{tpu_custom_call.1} parent=27 // pred_check_branch
          %351 = sbr.rel (%p349) target = $region36
        $region35: #{tpu_custom_call.1} parent=27 // pred_region
          %v352 = vld [vmem:[#allocation2] sm:$0xff]
          %v353 = vld [vmem:[#allocation2 + $0x8] sm:$0xff]
          %v354 = vld [vmem:[#allocation2 + $0x10] sm:$0xff]
          %v355 = vld [vmem:[#allocation2 + $0x18] sm:$0xff]
          %356 = vmatprep.subr.mxu0 0.0
          %357 = vmatpush1.xpose.msra.mxu0 0.0
          %358 = vmatprep.subr.mxu0 0.0
          %359 = vmatpush1.xpose.msra.mxu0 0.0
          %360 = vmatprep.subr.mxu0 0.0
          %361 = vmatpush1.xpose.msra.mxu0 0.0
          %362 = vmatprep.subr.mxu0 0.0
          %363 = vmatpush1.xpose.msra.mxu0 0.0
          %364 = vmatprep.subr.mxu0 0.0
          %365 = vmatpush1.xpose.msra.mxu0 0.0
          %366 = vmatprep.subr.mxu0 0.0
          %367 = vmatpush1.xpose.msra.mxu0 0.0
          %368 = vmatprep.subr.mxu0 0.0
          %369 = vmatpush1.xpose.msra.mxu0 0.0
          %370 = vmatprep.subr.mxu0 0.0
          %371 = vmatpush1.xpose.msra.mxu0 0.0
          %372 = vmatprep.subr.mxu0 0.0
          %373 = vmatpush1.xpose.msra.mxu0 0.0
          %374 = vmatprep.subr.mxu0 0.0
          %375 = vmatpush1.xpose.msra.mxu0 0.0
          %376 = vmatprep.subr.mxu0 0.0
          %377 = vmatpush1.xpose.msra.mxu0 0.0
          %378 = vmatprep.subr.mxu0 0.0
          %379 = vmatpush1.xpose.msra.mxu0 0.0
          %380 = vmatprep.subr.mxu0 0.0
          %381 = vmatpush1.xpose.msra.mxu0 %v355
          %382 = vmatprep.subr.mxu0 0.0
          %383 = vmatpush1.xpose.msra.mxu0 %v354
          %384 = vmatprep.subr.mxu0 0.0
          %385 = vmatpush1.xpose.msra.mxu0 %v353
          %386 = vmatprep.subr.mxu0 0.0
          %387 = vmatpush1.xpose.msra.mxu0 %v352
          %388 = vmatprep.subr.mxu0 0.0
          %389 = vmatpush2.xpose.msra.mxu0 0.0
          %390 = vmatprep.subr.mxu0 0.0
          %391 = vmatpush2.xpose.msra.mxu0 0.0
          %392 = vmatprep.subr.mxu0 0.0
          %393 = vmatpush2.xpose.msra.mxu0 0.0
          %394 = vmatprep.subr.mxu0 0.0
          %395 = vmatpush2.xpose.msra.mxu0 0.0
          %396 = vmatprep.subr.mxu0 0.0
          %397 = vmatpush2.xpose.msra.mxu0 0.0
          %398 = vmatprep.subr.mxu0 0.0
          %399 = vmatpush2.xpose.msra.mxu0 0.0
          %400 = vmatprep.subr.mxu0 0.0
          %401 = vmatpush2.xpose.msra.mxu0 0.0
          %402 = vmatprep.subr.mxu0 0.0
          %403 = vmatpush2.xpose.msra.mxu0 0.0
          %404 = vmatprep.subr.mxu0 0.0
          %405 = vmatpush2.xpose.msra.mxu0 0.0
          %406 = vmatprep.subr.mxu0 0.0
          %407 = vmatpush2.xpose.msra.mxu0 0.0
          %408 = vmatprep.subr.mxu0 0.0
          %409 = vmatpush2.xpose.msra.mxu0 0.0
          %410 = vmatprep.subr.mxu0 0.0
          %411 = vmatpush2.xpose.msra.mxu0 0.0
          %412 = vmatprep.subr.mxu0 0.0
          %413 = vmatpush2.xpose.msra.mxu0 0.0
          %414 = vmatprep.subr.mxu0 0.0
          %415 = vmatpush2.xpose.msra.mxu0 0.0
          %416 = vmatprep.subr.mxu0 0.0
          %417 = vmatpush2.xpose.msra.mxu0 0.0
          %418 = vmatprep.subr.mxu0 0.0
          %419 = vmatpush2.xpose.msra.mxu0 0.0
          %420 = vmatprep.mubr.f32.mxu0 0.0
          %421 = vmatmul.mubr.f32.gmra.mxu0 1.0
          %v422 = vpop.f32.mrf.mxu0
          %v423 = vadd.f32 0.0, %v422
          %v424 = vpop.f32.mrf.mxu0
          %425 = vdwg.mxu0
          %v426 = vmul.f32 %v423, 0.5
          %vm427 = vcmask 253952
          %428 = vst.msk [vmem:[%s162] sm:$0x1] %vm427, %v426
        $region36: #{tpu_custom_call.1} parent=27 // pred_fallthru
          _
        %s429 = sand.u32 %s88, 1
        %s430 = scalar_lea.sflag [#allocation4], %s429
        %s431 = sand.u32 %s88, 1
        %s432 = scalar_lea.vmem [#allocation3], %s431
        // Predicated region
        $region37: #{tpu_custom_call.1} parent=27 // pred_check
          %p433 = pneg %p98
        $region38: #{tpu_custom_call.1} parent=27 // pred_check_branch
          %435 = sbr.rel (%p433) target = $region40
        $region39: #{tpu_custom_call.1} parent=27 // pred_region
          %s437 = ssub.s32 16, 16
          %438 = vsyncadd %s430, %s437
          %s439 = smul.addr %s20, 16
          %s440 = scalar_lea.hbm %s2, %s439
          %s442 = sshll.u32 %s432, 4
          %s443 = int_to_ptr.vmem [resolvable:$true] %s442
          %445 = dma.vmem_to_hbm [thread:$0]  %s443, 16, %s440, %s430
        $region40: #{tpu_custom_call.1} parent=27 // pred_fallthru
          _
      $region28: #{tpu_custom_call.1} parent=5 // pred_fallthru
        _
      %p446 = scmp.le.s32.totalorder 2, %s11
      // Predicated region
      $region41: #{tpu_custom_call.1} parent=5 // pred_check
        %p447 = pneg %p446
      $region42: #{tpu_custom_call.1} parent=5 // pred_check_branch
        %449 = sbr.rel (%p447) target = $region44
      $region43: #{tpu_custom_call.1} parent=5 // pred_region
        %s450 = ssub.s32 %s11, 2
        // Predicated region
        $region45: #{tpu_custom_call.1} parent=43 // pred_check
          %p451 = pneg %p104
        $region46: #{tpu_custom_call.1} parent=43 // pred_check_branch
          %453 = sbr.rel (%p451) target = $region48
        $region47: #{tpu_custom_call.1} parent=43 // pred_region
          %s454 = sand.u32 %s89, 1
          %s455 = scalar_lea.sflag [#allocation4], %s454
          %s456 = sand.u32 %s89, 1
          %s457 = scalar_lea.vmem [#allocation3], %s456
          %458 = dma.done %s455, 16
        $region48: #{tpu_custom_call.1} parent=43 // pred_fallthru
          _
      $region44: #{tpu_custom_call.1} parent=5 // pred_fallthru
        _
    $region6: #{tpu_custom_call.1} parent=1 // loop_footer
      %s15 = sadd.s32 1, %s11
    $region7: #{tpu_custom_call.1} parent=1 // loop_footer_branch
      %10 = sbr.rel target = $region3
    $region8: #{tpu_custom_call.1} parent=1 // loop_exit
      _
    %459 = vsyncpa [#allocation4], 1
    %s460 = scalar_lea.sflag [#allocation4], 1
    %461 = vsyncpa %s460, 1

</llo_original>
